<compile_context>
chip_gen: v6e
topology: v6e:2x2x1
jax: 0.10.0
libtpu: 0.0.40
codegen_flags: <defaults>
</compile_context>

<pallas_src>
import jax
import jax.numpy as jnp
from jax.experimental import pallas as pl
from jax.experimental.pallas import tpu as pltpu


def _round_up(x: int, m: int) -> int:
    return ((x + m - 1) // m) * m


def _choose_row_tile(rows: int, k: int, n_pad: int, itemsize: int,
                     target_block_bytes: int = 4 * 1024 * 1024) -> int:
    """Largest 8-aligned row tile whose input block is ~target_block_bytes."""
    tr = target_block_bytes // max(1, k * n_pad * itemsize)
    tr = max(8, (tr // 8) * 8)          # sublane-aligned
    tr = min(tr, _round_up(rows, 8))    # never bigger than the (padded) rows
    return int(tr)


def _max_pool_kernel(x_ref, val_ref, idx_ref):
    # x_ref: (TR, K, N_pad); val_ref/idx_ref: (TR, N_pad)
    # Single pass over K: running maximum + running argmax, all VPU
    # compare/select ops on (TR, N_pad) slabs (no 3-D iota, no second reduce).
    k_total = x_ref.shape[1]
    best_v = x_ref[:, 0, :]
    best_i = jnp.zeros(best_v.shape, jnp.int32)
    # K is small (number of kNN neighbours) and static -> fully unrolled,
    # static sublane offsets. For large K switch to lax.fori_loop(unroll=...).
    for k in range(1, k_total):
        xk = x_ref[:, k, :]
        take = xk > best_v                       # first-occurrence tie-break
        best_v = jnp.maximum(best_v, xk)         # NaN-propagating like torch
        best_i = jnp.where(take, jnp.int32(k), best_i)
    val_ref[...] = best_v
    idx_ref[...] = best_i                        # int32 (torch returns int64)


def _mean_pool_kernel(x_ref, out_ref):
    # x_ref: (TR, K, N_pad); out_ref: (TR, N_pad)
    # Explicit K-slice accumulation in float32, multiply by 1/K, cast on store.
    k_total = x_ref.shape[1]
    acc = x_ref[:, 0, :].astype(jnp.float32)
    for k in range(1, k_total):
        acc = acc + x_ref[:, k, :].astype(jnp.float32)
    out_ref[...] = (acc * (1.0 / k_total)).astype(out_ref.dtype)


def edge_convolution_pooling(x, conv_pooling: str):
    """Pallas implementation of EdgeConvolutionPooling.forward.

    x: [B, C, K, N] float array (B=n_minibatches, C=n_features, K=neighbours,
       N=n_tracks).
    Returns:
      'max'  -> (values [B, C, N], indices [B, C, N] int32)
      'mean' -> values [B, C, N]
    """
    if conv_pooling not in ("max", "mean"):
        raise NotImplementedError(f"Have not implemented {conv_pooling} pooling")

    B, C, K, N = x.shape
    rows = B * C
    itemsize = jnp.dtype(x.dtype).itemsize

    # --- layout plumbing: flatten B*C, pad lanes (N) and rows -------------
    n_pad = _round_up(N, 128)                       # lane-dense
    x2 = x.reshape(rows, K, N)
    tr = _choose_row_tile(rows, K, n_pad, itemsize)
    rows_pad = _round_up(rows, tr)                  # dense (TR, N_pad) blocks
    if (rows_pad - rows) or (n_pad - N):
        x2 = jnp.pad(x2, ((0, rows_pad - rows), (0, 0), (0, n_pad - N)))

    grid = (rows_pad // tr,)
    in_spec = pl.BlockSpec((tr, K, n_pad), lambda r: (r, 0, 0))
    out_spec = pl.BlockSpec((tr, n_pad), lambda r: (r, 0))

    blk_in_bytes = tr * K * n_pad * itemsize
    in_bytes = rows_pad * K * n_pad * itemsize

    if conv_pooling == "max":
        blk_out_bytes = tr * n_pad * (itemsize + 4)      # values + int32 idx
        out_bytes = rows_pad * n_pad * (itemsize + 4)
        vmem_limit = max(2 * blk_in_bytes + 2 * blk_out_bytes + (4 << 20),
                         16 << 20)
        values, indices = pl.pallas_call(
            _max_pool_kernel,
            out_shape=(
                jax.ShapeDtypeStruct((rows_pad, n_pad), x.dtype),
                jax.ShapeDtypeStruct((rows_pad, n_pad), jnp.int32),
            ),
            grid=grid,
            in_specs=[in_spec],
            out_specs=(out_spec, out_spec),
            compiler_params=pltpu.CompilerParams(
                dimension_semantics=("parallel",),
                vmem_limit_bytes=int(vmem_limit),
            ),
            cost_estimate=pl.CostEstimate(
                flops=int(2 * rows * K * N),
                transcendentals=0,
                bytes_accessed=int(in_bytes + out_bytes),
            ),
        )(x2)
        values = values[:rows, :N].reshape(B, C, N)
        indices = indices[:rows, :N].reshape(B, C, N)
        return values, indices

    # mean
    blk_out_bytes = tr * n_pad * itemsize
    out_bytes = rows_pad * n_pad * itemsize
    vmem_limit = max(2 * blk_in_bytes + 2 * blk_out_bytes + (4 << 20), 16 << 20)
    out = pl.pallas_call(
        _mean_pool_kernel,
        out_shape=jax.ShapeDtypeStruct((rows_pad, n_pad), x.dtype),
        grid=grid,
        in_specs=[in_spec],
        out_specs=out_spec,
        compiler_params=pltpu.CompilerParams(
            dimension_semantics=("parallel",),
            vmem_limit_bytes=int(vmem_limit),
        ),
        cost_estimate=pl.CostEstimate(
            flops=int(rows * K * N),
            transcendentals=0,
            bytes_accessed=int(in_bytes + out_bytes),
        ),
    )(x2)
    return out[:rows, :N].reshape(B, C, N)


if __name__ == "__main__":
    # Small shapes consistent with the module:
    #   n_minibatches=2, n_features=6, K=8, n_tracks=200
    # (n_tracks deliberately not a multiple of 128 and B*C not a multiple of
    #  the row tile, so both padding paths are exercised.)
    key = jax.random.PRNGKey(0)
    B, C, K, N = 2, 6, 8, 200
    x = jax.random.normal(key, (B, C, K, N), dtype=jnp.float32)

    # 'max' branch: (values, indices) like torch.max(X, dim=2)
    max_vals, max_idx = edge_convolution_pooling(x, "max")
    max_vals = jax.block_until_ready(max_vals)
    max_idx = jax.block_until_ready(max_idx)

    # 'mean' branch: values like torch.mean(X, dim=2)
    mean_vals = edge_convolution_pooling(x, "mean")
    mean_vals = jax.block_until_ready(mean_vals)

    # Correctness checks against pure-JAX reference.
    ref_max = jnp.max(x, axis=2)
    ref_idx = jnp.argmax(x, axis=2).astype(jnp.int32)
    ref_mean = jnp.mean(x, axis=2)
    assert max_vals.shape == (B, C, N) and max_idx.shape == (B, C, N)
    assert mean_vals.shape == (B, C, N)
    assert jnp.allclose(max_vals, ref_max)
    assert jnp.array_equal(max_idx, ref_idx)
    assert jnp.allclose(mean_vals, ref_mean, atol=1e-5, rtol=1e-5)

    print("KERNEL_OK")
</pallas_src>

<mosaic_0001>
module attributes {stable_mosaic.version = 11 : i64} {
  func.func @_max_pool_kernel(%arg0: i32, %arg1: memref<16x8x256xf32, #tpu.memory_space<vmem>>, %arg2: memref<16x256xf32, #tpu.memory_space<vmem>>, %arg3: memref<16x256xi32, #tpu.memory_space<vmem>>) attributes {dimension_semantics = [#tpu.dimension_semantics<parallel>], iteration_bounds = array<i64: 1>, scalar_prefetch = 0 : i64, scratch_operands = 0 : i64, tpu.core_type = #tpu.core_type<tc>, window_params = [{transform_indices = @transform_0, window_bounds = array<i64: 16, 8, 256>}, {transform_indices = @transform_1, window_bounds = array<i64: 16, 256>}, {transform_indices = @transform_2, window_bounds = array<i64: 16, 256>}]} {
    %c0 = arith.constant 0 : index
    %c0_0 = arith.constant 0 : index
    %c0_1 = arith.constant 0 : index
    %0 = vector.load %arg1[%c0, %c0_0, %c0_1] : memref<16x8x256xf32, #tpu.memory_space<vmem>>, vector<16x1x256xf32>
    %1 = vector.shape_cast %0 : vector<16x1x256xf32> to vector<16x256xf32>
    %c0_i32 = arith.constant 0 : i32
    %2 = vector.broadcast %c0_i32 : i32 to vector<16x256xi32>
    %c0_2 = arith.constant 0 : index
    %c1 = arith.constant 1 : index
    %c0_3 = arith.constant 0 : index
    %3 = vector.load %arg1[%c0_2, %c1, %c0_3] : memref<16x8x256xf32, #tpu.memory_space<vmem>>, vector<16x1x256xf32>
    %4 = vector.shape_cast %3 : vector<16x1x256xf32> to vector<16x256xf32>
    %5 = arith.cmpf ogt, %4, %1 : vector<16x256xf32>
    %6 = arith.maximumf %1, %4 : vector<16x256xf32>
    %c1_i32 = arith.constant 1 : i32
    %7 = vector.broadcast %c1_i32 : i32 to vector<16x256xi32>
    %8 = arith.select %5, %7, %2 : vector<16x256xi1>, vector<16x256xi32>
    %c0_4 = arith.constant 0 : index
    %c2 = arith.constant 2 : index
    %c0_5 = arith.constant 0 : index
    %9 = vector.load %arg1[%c0_4, %c2, %c0_5] : memref<16x8x256xf32, #tpu.memory_space<vmem>>, vector<16x1x256xf32>
    %10 = vector.shape_cast %9 : vector<16x1x256xf32> to vector<16x256xf32>
    %11 = arith.cmpf ogt, %10, %6 : vector<16x256xf32>
    %12 = arith.maximumf %6, %10 : vector<16x256xf32>
    %c2_i32 = arith.constant 2 : i32
    %13 = vector.broadcast %c2_i32 : i32 to vector<16x256xi32>
    %14 = arith.select %11, %13, %8 : vector<16x256xi1>, vector<16x256xi32>
    %c0_6 = arith.constant 0 : index
    %c3 = arith.constant 3 : index
    %c0_7 = arith.constant 0 : index
    %15 = vector.load %arg1[%c0_6, %c3, %c0_7] : memref<16x8x256xf32, #tpu.memory_space<vmem>>, vector<16x1x256xf32>
    %16 = vector.shape_cast %15 : vector<16x1x256xf32> to vector<16x256xf32>
    %17 = arith.cmpf ogt, %16, %12 : vector<16x256xf32>
    %18 = arith.maximumf %12, %16 : vector<16x256xf32>
    %c3_i32 = arith.constant 3 : i32
    %19 = vector.broadcast %c3_i32 : i32 to vector<16x256xi32>
    %20 = arith.select %17, %19, %14 : vector<16x256xi1>, vector<16x256xi32>
    %c0_8 = arith.constant 0 : index
    %c4 = arith.constant 4 : index
    %c0_9 = arith.constant 0 : index
    %21 = vector.load %arg1[%c0_8, %c4, %c0_9] : memref<16x8x256xf32, #tpu.memory_space<vmem>>, vector<16x1x256xf32>
    %22 = vector.shape_cast %21 : vector<16x1x256xf32> to vector<16x256xf32>
    %23 = arith.cmpf ogt, %22, %18 : vector<16x256xf32>
    %24 = arith.maximumf %18, %22 : vector<16x256xf32>
    %c4_i32 = arith.constant 4 : i32
    %25 = vector.broadcast %c4_i32 : i32 to vector<16x256xi32>
    %26 = arith.select %23, %25, %20 : vector<16x256xi1>, vector<16x256xi32>
    %c0_10 = arith.constant 0 : index
    %c5 = arith.constant 5 : index
    %c0_11 = arith.constant 0 : index
    %27 = vector.load %arg1[%c0_10, %c5, %c0_11] : memref<16x8x256xf32, #tpu.memory_space<vmem>>, vector<16x1x256xf32>
    %28 = vector.shape_cast %27 : vector<16x1x256xf32> to vector<16x256xf32>
    %29 = arith.cmpf ogt, %28, %24 : vector<16x256xf32>
    %30 = arith.maximumf %24, %28 : vector<16x256xf32>
    %c5_i32 = arith.constant 5 : i32
    %31 = vector.broadcast %c5_i32 : i32 to vector<16x256xi32>
    %32 = arith.select %29, %31, %26 : vector<16x256xi1>, vector<16x256xi32>
    %c0_12 = arith.constant 0 : index
    %c6 = arith.constant 6 : index
    %c0_13 = arith.constant 0 : index
    %33 = vector.load %arg1[%c0_12, %c6, %c0_13] : memref<16x8x256xf32, #tpu.memory_space<vmem>>, vector<16x1x256xf32>
    %34 = vector.shape_cast %33 : vector<16x1x256xf32> to vector<16x256xf32>
    %35 = arith.cmpf ogt, %34, %30 : vector<16x256xf32>
    %36 = arith.maximumf %30, %34 : vector<16x256xf32>
    %c6_i32 = arith.constant 6 : i32
    %37 = vector.broadcast %c6_i32 : i32 to vector<16x256xi32>
    %38 = arith.select %35, %37, %32 : vector<16x256xi1>, vector<16x256xi32>
    %c0_14 = arith.constant 0 : index
    %c7 = arith.constant 7 : index
    %c0_15 = arith.constant 0 : index
    %39 = vector.load %arg1[%c0_14, %c7, %c0_15] : memref<16x8x256xf32, #tpu.memory_space<vmem>>, vector<16x1x256xf32>
    %40 = vector.shape_cast %39 : vector<16x1x256xf32> to vector<16x256xf32>
    %41 = arith.cmpf ogt, %40, %36 : vector<16x256xf32>
    %42 = arith.maximumf %36, %40 : vector<16x256xf32>
    %c7_i32 = arith.constant 7 : i32
    %43 = vector.broadcast %c7_i32 : i32 to vector<16x256xi32>
    %44 = arith.select %41, %43, %38 : vector<16x256xi1>, vector<16x256xi32>
    %c0_16 = arith.constant 0 : index
    %c0_17 = arith.constant 0 : index
    %45 = vector.load %arg2[%c0_16, %c0_17] : memref<16x256xf32, #tpu.memory_space<vmem>>, vector<16x256xf32>
    tpu.vector_store %arg2[%c0_16, %c0_17], %42 {strides = array<i32>} : memref<16x256xf32, #tpu.memory_space<vmem>>, vector<16x256xf32>,
    %c0_18 = arith.constant 0 : index
    %c0_19 = arith.constant 0 : index
    %46 = vector.load %arg3[%c0_18, %c0_19] : memref<16x256xi32, #tpu.memory_space<vmem>>, vector<16x256xi32>
    tpu.vector_store %arg3[%c0_18, %c0_19], %44 {strides = array<i32>} : memref<16x256xi32, #tpu.memory_space<vmem>>, vector<16x256xi32>,
    return
  }
  func.func @transform_0(%arg0: i32) -> (i32, i32, i32) {
    %c0_i32 = arith.constant 0 : i32
    %c0_i32_0 = arith.constant 0 : i32
    %c0_i32_1 = arith.constant 0 : i32
    return %arg0, %c0_i32, %c0_i32_0 : i32, i32, i32
  }
  func.func @transform_1(%arg0: i32) -> (i32, i32) {
    %c0_i32 = arith.constant 0 : i32
    %c0_i32_0 = arith.constant 0 : i32
    return %arg0, %c0_i32 : i32, i32
  }
  func.func @transform_2(%arg0: i32) -> (i32, i32) {
    %c0_i32 = arith.constant 0 : i32
    %c0_i32_0 = arith.constant 0 : i32
    return %arg0, %c0_i32 : i32, i32
  }
}

</mosaic_0001>

<llo_original>
// kernel: tpu_custom_call.1
$region0: #{tpu_custom_call.1}
  #allocation0 [shape = 'u32[]', space=smem, size = 0x4, offset = 0x4, fixed_abs, tag = 'smem constant byte address 0x4 - core index']
  #allocation1 [shape = 'u32[144,128]{1,0:T(1,128)}', space=vmem, size = 0x12000, scoped, tag = 'internal scratch']
  %s0 = inlined_call_operand.hbm [shape: f32[16,8,256], index: 0, kind: input, shape index: {}]
  %s1 = inlined_call_operand.hbm [shape: f32[16,256], index: 1, kind: output, shape index: {0}]
  %s2 = inlined_call_operand.hbm [shape: s32[16,256], index: 2, kind: output, shape index: {1}]
  %3 = xla_tuple %s1, %s2
  %s4 = sld [smem:[#allocation0]]
  $region26: #{tpu_custom_call.1} parent=0
    _
  %s6 = ssub.s32 1, %s4
  %s7 = scalar_select 0, %s6, %s4
  $region1: #{tpu_custom_call.1} parent=0
    #allocation2 [shape = 'u8[131072]{0}', space=vmem, size = 0x20000, scoped, tag = 'input window, operand 0, single buffered']
    #allocation3 [shape = 's32[1]{0}', space=sflag, size = 0x4, scoped, tag = 'scoped memory for tpu_custom_call.1']
    #allocation4 [shape = 's32[1]{0}', space=sflag, size = 0x4, scoped, tag = 'scoped memory for tpu_custom_call.1']
    #allocation5 [shape = 'u8[16384]{0}', space=vmem, size = 0x4000, scoped, tag = 'output window, operand 0, single buffered']
    #allocation6 [shape = 'u8[16384]{0}', space=vmem, size = 0x4000, scoped, tag = 'output window, operand 1, single buffered']
    #allocation7 [shape = 's32[1]{0}', space=sflag, size = 0x4, scoped, tag = 'scoped memory for tpu_custom_call.1']
    %8 = vsyncpa [#allocation3], 0
    %9 = vsyncpa [#allocation4], 0
    %10 = vsyncpa [#allocation7], 0
    // Predicated region
    $region2: #{tpu_custom_call.1} parent=1 // pred_check
      _
    $region3: #{tpu_custom_call.1} parent=1 // pred_check_branch
      %12 = sbr.rel (0) target = $region5
    $region4: #{tpu_custom_call.1} parent=1 // pred_region
      %s14 = ssub.s32 4096, 4096
      %15 = vsyncadd [#allocation3], %s14
      %s16 = sshll.u32 [#allocation2], 4
      %s17 = int_to_ptr.vmem [resolvable:$true] %s16
      %22 = dma.hbm_to_vmem [thread:$0]  %s0, 4096, %s17, [#allocation3], 256, 256, 16
    $region5: #{tpu_custom_call.1} parent=1 // pred_fallthru
      _
    // Predicated region
    $region6: #{tpu_custom_call.1} parent=1 // pred_check
      _
    $region7: #{tpu_custom_call.1} parent=1 // pred_check_branch
      %24 = sbr.rel (0) target = $region9
    $region8: #{tpu_custom_call.1} parent=1 // pred_region
      %25 = dma.done [#allocation3], 4096
    $region9: #{tpu_custom_call.1} parent=1 // pred_fallthru
      _
    %v26 = vld [vmem:[#allocation2] ss:$8 sm:$0x3]
    %s27 = scalar_lea.vmem [#allocation2], 16
    %v28 = vld [vmem:[%s27] ss:$8 sm:$0x3]
    %s29 = scalar_lea.vmem [#allocation2], 32
    %v30 = vld [vmem:[%s29] ss:$8 sm:$0x3]
    %s31 = scalar_lea.vmem [#allocation2], 48
    %v32 = vld [vmem:[%s31] ss:$8 sm:$0x3]
    %s33 = scalar_lea.vmem [#allocation2], 64
    %v34 = vld [vmem:[%s33] ss:$8 sm:$0x3]
    %s35 = scalar_lea.vmem [#allocation2], 80
    %v36 = vld [vmem:[%s35] ss:$8 sm:$0x3]
    %s37 = scalar_lea.vmem [#allocation2], 96
    %v38 = vld [vmem:[%s37] ss:$8 sm:$0x3]
    %s39 = scalar_lea.vmem [#allocation2], 112
    %v40 = vld [vmem:[%s39] ss:$8 sm:$0x3]
    %s41 = scalar_lea.vmem [#allocation2], 128
    %v42 = vld [vmem:[%s41] ss:$8 sm:$0x3]
    %s43 = scalar_lea.vmem [#allocation2], 144
    %v44 = vld [vmem:[%s43] ss:$8 sm:$0x3]
    %s45 = scalar_lea.vmem [#allocation2], 160
    %v46 = vld [vmem:[%s45] ss:$8 sm:$0x3]
    %s47 = scalar_lea.vmem [#allocation2], 176
    %v48 = vld [vmem:[%s47] ss:$8 sm:$0x3]
    %s49 = scalar_lea.vmem [#allocation2], 192
    %v50 = vld [vmem:[%s49] ss:$8 sm:$0x3]
    %s51 = scalar_lea.vmem [#allocation2], 208
    %v52 = vld [vmem:[%s51] ss:$8 sm:$0x3]
    %s53 = scalar_lea.vmem [#allocation2], 224
    %v54 = vld [vmem:[%s53] ss:$8 sm:$0x3]
    %s55 = scalar_lea.vmem [#allocation2], 240
    %v56 = vld [vmem:[%s55] ss:$8 sm:$0x3]
    %s57 = scalar_lea.vmem [#allocation2], 1
    %v58 = vld [vmem:[%s57] ss:$8 sm:$0x3]
    %s59 = scalar_lea.vmem [#allocation2], 17
    %v60 = vld [vmem:[%s59] ss:$8 sm:$0x3]
    %s61 = scalar_lea.vmem [#allocation2], 33
    %v62 = vld [vmem:[%s61] ss:$8 sm:$0x3]
    %s63 = scalar_lea.vmem [#allocation2], 49
    %v64 = vld [vmem:[%s63] ss:$8 sm:$0x3]
    %s65 = scalar_lea.vmem [#allocation2], 65
    %v66 = vld [vmem:[%s65] ss:$8 sm:$0x3]
    %s67 = scalar_lea.vmem [#allocation2], 81
    %v68 = vld [vmem:[%s67] ss:$8 sm:$0x3]
    %s69 = scalar_lea.vmem [#allocation2], 97
    %v70 = vld [vmem:[%s69] ss:$8 sm:$0x3]
    %s71 = scalar_lea.vmem [#allocation2], 113
    %v72 = vld [vmem:[%s71] ss:$8 sm:$0x3]
    %s73 = scalar_lea.vmem [#allocation2], 129
    %v74 = vld [vmem:[%s73] ss:$8 sm:$0x3]
    %s75 = scalar_lea.vmem [#allocation2], 145
    %v76 = vld [vmem:[%s75] ss:$8 sm:$0x3]
    %s77 = scalar_lea.vmem [#allocation2], 161
    %v78 = vld [vmem:[%s77] ss:$8 sm:$0x3]
    %s79 = scalar_lea.vmem [#allocation2], 177
    %v80 = vld [vmem:[%s79] ss:$8 sm:$0x3]
    %s81 = scalar_lea.vmem [#allocation2], 193
    %v82 = vld [vmem:[%s81] ss:$8 sm:$0x3]
    %s83 = scalar_lea.vmem [#allocation2], 209
    %v84 = vld [vmem:[%s83] ss:$8 sm:$0x3]
    %s85 = scalar_lea.vmem [#allocation2], 225
    %v86 = vld [vmem:[%s85] ss:$8 sm:$0x3]
    %s87 = scalar_lea.vmem [#allocation2], 241
    %v88 = vld [vmem:[%s87] ss:$8 sm:$0x3]
    %vm89 = vcmp.gt.f32.partialorder %v58, %v26
    %vm90 = vcmp.gt.f32.partialorder %v60, %v28
    %vm91 = vcmp.gt.f32.partialorder %v62, %v30
    %vm92 = vcmp.gt.f32.partialorder %v64, %v32
    %vm93 = vcmp.gt.f32.partialorder %v66, %v34
    %vm94 = vcmp.gt.f32.partialorder %v68, %v36
    %vm95 = vcmp.gt.f32.partialorder %v70, %v38
    %vm96 = vcmp.gt.f32.partialorder %v72, %v40
    %vm97 = vcmp.gt.f32.partialorder %v74, %v42
    %vm98 = vcmp.gt.f32.partialorder %v76, %v44
    %vm99 = vcmp.gt.f32.partialorder %v78, %v46
    %vm100 = vcmp.gt.f32.partialorder %v80, %v48
    %vm101 = vcmp.gt.f32.partialorder %v82, %v50
    %vm102 = vcmp.gt.f32.partialorder %v84, %v52
    %vm103 = vcmp.gt.f32.partialorder %v86, %v54
    %vm104 = vcmp.gt.f32.partialorder %v88, %v56
    %v105 = vmax.f32 %v26, %v58
    %v106 = vmax.f32 %v28, %v60
    %v107 = vmax.f32 %v30, %v62
    %v108 = vmax.f32 %v32, %v64
    %v109 = vmax.f32 %v34, %v66
    %v110 = vmax.f32 %v36, %v68
    %v111 = vmax.f32 %v38, %v70
    %v112 = vmax.f32 %v40, %v72
    %v113 = vmax.f32 %v42, %v74
    %v114 = vmax.f32 %v44, %v76
    %v115 = vmax.f32 %v46, %v78
    %v116 = vmax.f32 %v48, %v80
    %v117 = vmax.f32 %v50, %v82
    %v118 = vmax.f32 %v52, %v84
    %v119 = vmax.f32 %v54, %v86
    %v120 = vmax.f32 %v56, %v88
    %v121 = vsel %vm89, 1, 0
    %v122 = vsel %vm90, 1, 0
    %v123 = vsel %vm91, 1, 0
    %v124 = vsel %vm92, 1, 0
    %v125 = vsel %vm93, 1, 0
    %v126 = vsel %vm94, 1, 0
    %v127 = vsel %vm95, 1, 0
    %v128 = vsel %vm96, 1, 0
    %v129 = vsel %vm97, 1, 0
    %v130 = vsel %vm98, 1, 0
    %v131 = vsel %vm99, 1, 0
    %v132 = vsel %vm100, 1, 0
    %v133 = vsel %vm101, 1, 0
    %v134 = vsel %vm102, 1, 0
    %v135 = vsel %vm103, 1, 0
    %v136 = vsel %vm104, 1, 0
    %s137 = scalar_lea.vmem [#allocation2], 2
    %v138 = vld [vmem:[%s137] ss:$8 sm:$0x3]
    %s139 = scalar_lea.vmem [#allocation2], 18
    %v140 = vld [vmem:[%s139] ss:$8 sm:$0x3]
    %s141 = scalar_lea.vmem [#allocation2], 34
    %v142 = vld [vmem:[%s141] ss:$8 sm:$0x3]
    %s143 = scalar_lea.vmem [#allocation2], 50
    %v144 = vld [vmem:[%s143] ss:$8 sm:$0x3]
    %s145 = scalar_lea.vmem [#allocation2], 66
    %v146 = vld [vmem:[%s145] ss:$8 sm:$0x3]
    %s147 = scalar_lea.vmem [#allocation2], 82
    %v148 = vld [vmem:[%s147] ss:$8 sm:$0x3]
    %s149 = scalar_lea.vmem [#allocation2], 98
    %v150 = vld [vmem:[%s149] ss:$8 sm:$0x3]
    %s151 = scalar_lea.vmem [#allocation2], 114
    %v152 = vld [vmem:[%s151] ss:$8 sm:$0x3]
    %s153 = scalar_lea.vmem [#allocation2], 130
    %v154 = vld [vmem:[%s153] ss:$8 sm:$0x3]
    %s155 = scalar_lea.vmem [#allocation2], 146
    %v156 = vld [vmem:[%s155] ss:$8 sm:$0x3]
    %s157 = scalar_lea.vmem [#allocation2], 162
    %v158 = vld [vmem:[%s157] ss:$8 sm:$0x3]
    %s159 = scalar_lea.vmem [#allocation2], 178
    %v160 = vld [vmem:[%s159] ss:$8 sm:$0x3]
    %s161 = scalar_lea.vmem [#allocation2], 194
    %v162 = vld [vmem:[%s161] ss:$8 sm:$0x3]
    %s163 = scalar_lea.vmem [#allocation2], 210
    %v164 = vld [vmem:[%s163] ss:$8 sm:$0x3]
    %s165 = scalar_lea.vmem [#allocation2], 226
    %v166 = vld [vmem:[%s165] ss:$8 sm:$0x3]
    %s167 = scalar_lea.vmem [#allocation2], 242
    %v168 = vld [vmem:[%s167] ss:$8 sm:$0x3]
    %vm169 = vcmp.gt.f32.partialorder %v138, %v105
    %vm170 = vcmp.gt.f32.partialorder %v140, %v106
    %vm171 = vcmp.gt.f32.partialorder %v142, %v107
    %vm172 = vcmp.gt.f32.partialorder %v144, %v108
    %vm173 = vcmp.gt.f32.partialorder %v146, %v109
    %vm174 = vcmp.gt.f32.partialorder %v148, %v110
    %vm175 = vcmp.gt.f32.partialorder %v150, %v111
    %vm176 = vcmp.gt.f32.partialorder %v152, %v112
    %vm177 = vcmp.gt.f32.partialorder %v154, %v113
    %vm178 = vcmp.gt.f32.partialorder %v156, %v114
    %vm179 = vcmp.gt.f32.partialorder %v158, %v115
    %vm180 = vcmp.gt.f32.partialorder %v160, %v116
    %vm181 = vcmp.gt.f32.partialorder %v162, %v117
    %vm182 = vcmp.gt.f32.partialorder %v164, %v118
    %vm183 = vcmp.gt.f32.partialorder %v166, %v119
    %vm184 = vcmp.gt.f32.partialorder %v168, %v120
    %v185 = vmax.f32 %v105, %v138
    %v186 = vmax.f32 %v106, %v140
    %v187 = vmax.f32 %v107, %v142
    %v188 = vmax.f32 %v108, %v144
    %v189 = vmax.f32 %v109, %v146
    %v190 = vmax.f32 %v110, %v148
    %v191 = vmax.f32 %v111, %v150
    %v192 = vmax.f32 %v112, %v152
    %v193 = vmax.f32 %v113, %v154
    %v194 = vmax.f32 %v114, %v156
    %v195 = vmax.f32 %v115, %v158
    %v196 = vmax.f32 %v116, %v160
    %v197 = vmax.f32 %v117, %v162
    %v198 = vmax.f32 %v118, %v164
    %v199 = vmax.f32 %v119, %v166
    %v200 = vmax.f32 %v120, %v168
    %v201 = vsel %vm169, 2, %v121
    %v202 = vsel %vm170, 2, %v122
    %v203 = vsel %vm171, 2, %v123
    %v204 = vsel %vm172, 2, %v124
    %v205 = vsel %vm173, 2, %v125
    %v206 = vsel %vm174, 2, %v126
    %v207 = vsel %vm175, 2, %v127
    %v208 = vsel %vm176, 2, %v128
    %v209 = vsel %vm177, 2, %v129
    %v210 = vsel %vm178, 2, %v130
    %v211 = vsel %vm179, 2, %v131
    %v212 = vsel %vm180, 2, %v132
    %v213 = vsel %vm181, 2, %v133
    %v214 = vsel %vm182, 2, %v134
    %v215 = vsel %vm183, 2, %v135
    %v216 = vsel %vm184, 2, %v136
    %s217 = scalar_lea.vmem [#allocation2], 3
    %v218 = vld [vmem:[%s217] ss:$8 sm:$0x3]
    %s219 = scalar_lea.vmem [#allocation2], 19
    %v220 = vld [vmem:[%s219] ss:$8 sm:$0x3]
    %s221 = scalar_lea.vmem [#allocation2], 35
    %v222 = vld [vmem:[%s221] ss:$8 sm:$0x3]
    %s223 = scalar_lea.vmem [#allocation2], 51
    %v224 = vld [vmem:[%s223] ss:$8 sm:$0x3]
    %s225 = scalar_lea.vmem [#allocation2], 67
    %v226 = vld [vmem:[%s225] ss:$8 sm:$0x3]
    %s227 = scalar_lea.vmem [#allocation2], 83
    %v228 = vld [vmem:[%s227] ss:$8 sm:$0x3]
    %s229 = scalar_lea.vmem [#allocation2], 99
    %v230 = vld [vmem:[%s229] ss:$8 sm:$0x3]
    %s231 = scalar_lea.vmem [#allocation2], 115
    %v232 = vld [vmem:[%s231] ss:$8 sm:$0x3]
    %s233 = scalar_lea.vmem [#allocation2], 131
    %v234 = vld [vmem:[%s233] ss:$8 sm:$0x3]
    %s235 = scalar_lea.vmem [#allocation2], 147
    %v236 = vld [vmem:[%s235] ss:$8 sm:$0x3]
    %s237 = scalar_lea.vmem [#allocation2], 163
    %v238 = vld [vmem:[%s237] ss:$8 sm:$0x3]
    %s239 = scalar_lea.vmem [#allocation2], 179
    %v240 = vld [vmem:[%s239] ss:$8 sm:$0x3]
    %s241 = scalar_lea.vmem [#allocation2], 195
    %v242 = vld [vmem:[%s241] ss:$8 sm:$0x3]
    %s243 = scalar_lea.vmem [#allocation2], 211
    %v244 = vld [vmem:[%s243] ss:$8 sm:$0x3]
    %s245 = scalar_lea.vmem [#allocation2], 227
    %v246 = vld [vmem:[%s245] ss:$8 sm:$0x3]
    %s247 = scalar_lea.vmem [#allocation2], 243
    %v248 = vld [vmem:[%s247] ss:$8 sm:$0x3]
    %vm249 = vcmp.gt.f32.partialorder %v218, %v185
    %vm250 = vcmp.gt.f32.partialorder %v220, %v186
    %vm251 = vcmp.gt.f32.partialorder %v222, %v187
    %vm252 = vcmp.gt.f32.partialorder %v224, %v188
    %vm253 = vcmp.gt.f32.partialorder %v226, %v189
    %vm254 = vcmp.gt.f32.partialorder %v228, %v190
    %vm255 = vcmp.gt.f32.partialorder %v230, %v191
    %vm256 = vcmp.gt.f32.partialorder %v232, %v192
    %vm257 = vcmp.gt.f32.partialorder %v234, %v193
    %vm258 = vcmp.gt.f32.partialorder %v236, %v194
    %vm259 = vcmp.gt.f32.partialorder %v238, %v195
    %vm260 = vcmp.gt.f32.partialorder %v240, %v196
    %vm261 = vcmp.gt.f32.partialorder %v242, %v197
    %vm262 = vcmp.gt.f32.partialorder %v244, %v198
    %vm263 = vcmp.gt.f32.partialorder %v246, %v199
    %vm264 = vcmp.gt.f32.partialorder %v248, %v200
    %v265 = vmax.f32 %v185, %v218
    %v266 = vmax.f32 %v186, %v220
    %v267 = vmax.f32 %v187, %v222
    %v268 = vmax.f32 %v188, %v224
    %v269 = vmax.f32 %v189, %v226
    %v270 = vmax.f32 %v190, %v228
    %v271 = vmax.f32 %v191, %v230
    %v272 = vmax.f32 %v192, %v232
    %v273 = vmax.f32 %v193, %v234
    %v274 = vmax.f32 %v194, %v236
    %v275 = vmax.f32 %v195, %v238
    %v276 = vmax.f32 %v196, %v240
    %v277 = vmax.f32 %v197, %v242
    %v278 = vmax.f32 %v198, %v244
    %v279 = vmax.f32 %v199, %v246
    %v280 = vmax.f32 %v200, %v248
    %v281 = vsel %vm249, 3, %v201
    %v282 = vsel %vm250, 3, %v202
    %v283 = vsel %vm251, 3, %v203
    %v284 = vsel %vm252, 3, %v204
    %v285 = vsel %vm253, 3, %v205
    %v286 = vsel %vm254, 3, %v206
    %v287 = vsel %vm255, 3, %v207
    %v288 = vsel %vm256, 3, %v208
    %v289 = vsel %vm257, 3, %v209
    %v290 = vsel %vm258, 3, %v210
    %v291 = vsel %vm259, 3, %v211
    %v292 = vsel %vm260, 3, %v212
    %v293 = vsel %vm261, 3, %v213
    %v294 = vsel %vm262, 3, %v214
    %v295 = vsel %vm263, 3, %v215
    %v296 = vsel %vm264, 3, %v216
    %s297 = scalar_lea.vmem [#allocation2], 4
    %v298 = vld [vmem:[%s297] ss:$8 sm:$0x3]
    %s299 = scalar_lea.vmem [#allocation2], 20
    %v300 = vld [vmem:[%s299] ss:$8 sm:$0x3]
    %s301 = scalar_lea.vmem [#allocation2], 36
    %v302 = vld [vmem:[%s301] ss:$8 sm:$0x3]
    %s303 = scalar_lea.vmem [#allocation2], 52
    %v304 = vld [vmem:[%s303] ss:$8 sm:$0x3]
    %s305 = scalar_lea.vmem [#allocation2], 68
    %v306 = vld [vmem:[%s305] ss:$8 sm:$0x3]
    %s307 = scalar_lea.vmem [#allocation2], 84
    %v308 = vld [vmem:[%s307] ss:$8 sm:$0x3]
    %s309 = scalar_lea.vmem [#allocation2], 100
    %v310 = vld [vmem:[%s309] ss:$8 sm:$0x3]
    %s311 = scalar_lea.vmem [#allocation2], 116
    %v312 = vld [vmem:[%s311] ss:$8 sm:$0x3]
    %s313 = scalar_lea.vmem [#allocation2], 132
    %v314 = vld [vmem:[%s313] ss:$8 sm:$0x3]
    %s315 = scalar_lea.vmem [#allocation2], 148
    %v316 = vld [vmem:[%s315] ss:$8 sm:$0x3]
    %s317 = scalar_lea.vmem [#allocation2], 164
    %v318 = vld [vmem:[%s317] ss:$8 sm:$0x3]
    %s319 = scalar_lea.vmem [#allocation2], 180
    %v320 = vld [vmem:[%s319] ss:$8 sm:$0x3]
    %s321 = scalar_lea.vmem [#allocation2], 196
    %v322 = vld [vmem:[%s321] ss:$8 sm:$0x3]
    %s323 = scalar_lea.vmem [#allocation2], 212
    %v324 = vld [vmem:[%s323] ss:$8 sm:$0x3]
    %s325 = scalar_lea.vmem [#allocation2], 228
    %v326 = vld [vmem:[%s325] ss:$8 sm:$0x3]
    %s327 = scalar_lea.vmem [#allocation2], 244
    %v328 = vld [vmem:[%s327] ss:$8 sm:$0x3]
    %vm329 = vcmp.gt.f32.partialorder %v298, %v265
    %vm330 = vcmp.gt.f32.partialorder %v300, %v266
    %vm331 = vcmp.gt.f32.partialorder %v302, %v267
    %vm332 = vcmp.gt.f32.partialorder %v304, %v268
    %vm333 = vcmp.gt.f32.partialorder %v306, %v269
    %vm334 = vcmp.gt.f32.partialorder %v308, %v270
    %vm335 = vcmp.gt.f32.partialorder %v310, %v271
    %vm336 = vcmp.gt.f32.partialorder %v312, %v272
    %vm337 = vcmp.gt.f32.partialorder %v314, %v273
    %vm338 = vcmp.gt.f32.partialorder %v316, %v274
    %vm339 = vcmp.gt.f32.partialorder %v318, %v275
    %vm340 = vcmp.gt.f32.partialorder %v320, %v276
    %vm341 = vcmp.gt.f32.partialorder %v322, %v277
    %vm342 = vcmp.gt.f32.partialorder %v324, %v278
    %vm343 = vcmp.gt.f32.partialorder %v326, %v279
    %vm344 = vcmp.gt.f32.partialorder %v328, %v280
    %v345 = vmax.f32 %v265, %v298
    %v346 = vmax.f32 %v266, %v300
    %v347 = vmax.f32 %v267, %v302
    %v348 = vmax.f32 %v268, %v304
    %v349 = vmax.f32 %v269, %v306
    %v350 = vmax.f32 %v270, %v308
    %v351 = vmax.f32 %v271, %v310
    %v352 = vmax.f32 %v272, %v312
    %v353 = vmax.f32 %v273, %v314
    %v354 = vmax.f32 %v274, %v316
    %v355 = vmax.f32 %v275, %v318
    %v356 = vmax.f32 %v276, %v320
    %v357 = vmax.f32 %v277, %v322
    %v358 = vmax.f32 %v278, %v324
    %v359 = vmax.f32 %v279, %v326
    %v360 = vmax.f32 %v280, %v328
    %v361 = vsel %vm329, 4, %v281
    %v362 = vsel %vm330, 4, %v282
    %v363 = vsel %vm331, 4, %v283
    %v364 = vsel %vm332, 4, %v284
    %v365 = vsel %vm333, 4, %v285
    %v366 = vsel %vm334, 4, %v286
    %v367 = vsel %vm335, 4, %v287
    %v368 = vsel %vm336, 4, %v288
    %v369 = vsel %vm337, 4, %v289
    %v370 = vsel %vm338, 4, %v290
    %v371 = vsel %vm339, 4, %v291
    %v372 = vsel %vm340, 4, %v292
    %v373 = vsel %vm341, 4, %v293
    %v374 = vsel %vm342, 4, %v294
    %v375 = vsel %vm343, 4, %v295
    %v376 = vsel %vm344, 4, %v296
    %s377 = scalar_lea.vmem [#allocation2], 5
    %v378 = vld [vmem:[%s377] ss:$8 sm:$0x3]
    %s379 = scalar_lea.vmem [#allocation2], 21
    %v380 = vld [vmem:[%s379] ss:$8 sm:$0x3]
    %s381 = scalar_lea.vmem [#allocation2], 37
    %v382 = vld [vmem:[%s381] ss:$8 sm:$0x3]
    %s383 = scalar_lea.vmem [#allocation2], 53
    %v384 = vld [vmem:[%s383] ss:$8 sm:$0x3]
    %s385 = scalar_lea.vmem [#allocation2], 69
    %v386 = vld [vmem:[%s385] ss:$8 sm:$0x3]
    %s387 = scalar_lea.vmem [#allocation2], 85
    %v388 = vld [vmem:[%s387] ss:$8 sm:$0x3]
    %s389 = scalar_lea.vmem [#allocation2], 101
    %v390 = vld [vmem:[%s389] ss:$8 sm:$0x3]
    %s391 = scalar_lea.vmem [#allocation2], 117
    %v392 = vld [vmem:[%s391] ss:$8 sm:$0x3]
    %s393 = scalar_lea.vmem [#allocation2], 133
    %v394 = vld [vmem:[%s393] ss:$8 sm:$0x3]
    %s395 = scalar_lea.vmem [#allocation2], 149
    %v396 = vld [vmem:[%s395] ss:$8 sm:$0x3]
    %s397 = scalar_lea.vmem [#allocation2], 165
    %v398 = vld [vmem:[%s397] ss:$8 sm:$0x3]
    %s399 = scalar_lea.vmem [#allocation2], 181
    %v400 = vld [vmem:[%s399] ss:$8 sm:$0x3]
    %s401 = scalar_lea.vmem [#allocation2], 197
    %v402 = vld [vmem:[%s401] ss:$8 sm:$0x3]
    %s403 = scalar_lea.vmem [#allocation2], 213
    %v404 = vld [vmem:[%s403] ss:$8 sm:$0x3]
    %s405 = scalar_lea.vmem [#allocation2], 229
    %v406 = vld [vmem:[%s405] ss:$8 sm:$0x3]
    %s407 = scalar_lea.vmem [#allocation2], 245
    %v408 = vld [vmem:[%s407] ss:$8 sm:$0x3]
    %vm409 = vcmp.gt.f32.partialorder %v378, %v345
    %vm410 = vcmp.gt.f32.partialorder %v380, %v346
    %vm411 = vcmp.gt.f32.partialorder %v382, %v347
    %vm412 = vcmp.gt.f32.partialorder %v384, %v348
    %vm413 = vcmp.gt.f32.partialorder %v386, %v349
    %vm414 = vcmp.gt.f32.partialorder %v388, %v350
    %vm415 = vcmp.gt.f32.partialorder %v390, %v351
    %vm416 = vcmp.gt.f32.partialorder %v392, %v352
    %vm417 = vcmp.gt.f32.partialorder %v394, %v353
    %vm418 = vcmp.gt.f32.partialorder %v396, %v354
    %vm419 = vcmp.gt.f32.partialorder %v398, %v355
    %vm420 = vcmp.gt.f32.partialorder %v400, %v356
    %vm421 = vcmp.gt.f32.partialorder %v402, %v357
    %vm422 = vcmp.gt.f32.partialorder %v404, %v358
    %vm423 = vcmp.gt.f32.partialorder %v406, %v359
    %vm424 = vcmp.gt.f32.partialorder %v408, %v360
    %v425 = vmax.f32 %v345, %v378
    %v426 = vmax.f32 %v346, %v380
    %v427 = vmax.f32 %v347, %v382
    %v428 = vmax.f32 %v348, %v384
    %v429 = vmax.f32 %v349, %v386
    %v430 = vmax.f32 %v350, %v388
    %v431 = vmax.f32 %v351, %v390
    %v432 = vmax.f32 %v352, %v392
    %v433 = vmax.f32 %v353, %v394
    %v434 = vmax.f32 %v354, %v396
    %v435 = vmax.f32 %v355, %v398
    %v436 = vmax.f32 %v356, %v400
    %v437 = vmax.f32 %v357, %v402
    %v438 = vmax.f32 %v358, %v404
    %v439 = vmax.f32 %v359, %v406
    %v440 = vmax.f32 %v360, %v408
    %v441 = vsel %vm409, 5, %v361
    %v442 = vsel %vm410, 5, %v362
    %v443 = vsel %vm411, 5, %v363
    %v444 = vsel %vm412, 5, %v364
    %v445 = vsel %vm413, 5, %v365
    %v446 = vsel %vm414, 5, %v366
    %v447 = vsel %vm415, 5, %v367
    %v448 = vsel %vm416, 5, %v368
    %v449 = vsel %vm417, 5, %v369
    %v450 = vsel %vm418, 5, %v370
    %v451 = vsel %vm419, 5, %v371
    %v452 = vsel %vm420, 5, %v372
    %v453 = vsel %vm421, 5, %v373
    %v454 = vsel %vm422, 5, %v374
    %v455 = vsel %vm423, 5, %v375
    %v456 = vsel %vm424, 5, %v376
    %s457 = scalar_lea.vmem [#allocation2], 6
    %v458 = vld [vmem:[%s457] ss:$8 sm:$0x3]
    %s459 = scalar_lea.vmem [#allocation2], 22
    %v460 = vld [vmem:[%s459] ss:$8 sm:$0x3]
    %s461 = scalar_lea.vmem [#allocation2], 38
    %v462 = vld [vmem:[%s461] ss:$8 sm:$0x3]
    %s463 = scalar_lea.vmem [#allocation2], 54
    %v464 = vld [vmem:[%s463] ss:$8 sm:$0x3]
    %s465 = scalar_lea.vmem [#allocation2], 70
    %v466 = vld [vmem:[%s465] ss:$8 sm:$0x3]
    %s467 = scalar_lea.vmem [#allocation2], 86
    %v468 = vld [vmem:[%s467] ss:$8 sm:$0x3]
    %s469 = scalar_lea.vmem [#allocation2], 102
    %v470 = vld [vmem:[%s469] ss:$8 sm:$0x3]
    %s471 = scalar_lea.vmem [#allocation2], 118
    %v472 = vld [vmem:[%s471] ss:$8 sm:$0x3]
    %s473 = scalar_lea.vmem [#allocation2], 134
    %v474 = vld [vmem:[%s473] ss:$8 sm:$0x3]
    %s475 = scalar_lea.vmem [#allocation2], 150
    %v476 = vld [vmem:[%s475] ss:$8 sm:$0x3]
    %s477 = scalar_lea.vmem [#allocation2], 166
    %v478 = vld [vmem:[%s477] ss:$8 sm:$0x3]
    %s479 = scalar_lea.vmem [#allocation2], 182
    %v480 = vld [vmem:[%s479] ss:$8 sm:$0x3]
    %s481 = scalar_lea.vmem [#allocation2], 198
    %v482 = vld [vmem:[%s481] ss:$8 sm:$0x3]
    %s483 = scalar_lea.vmem [#allocation2], 214
    %v484 = vld [vmem:[%s483] ss:$8 sm:$0x3]
    %s485 = scalar_lea.vmem [#allocation2], 230
    %v486 = vld [vmem:[%s485] ss:$8 sm:$0x3]
    %s487 = scalar_lea.vmem [#allocation2], 246
    %v488 = vld [vmem:[%s487] ss:$8 sm:$0x3]
    %vm489 = vcmp.gt.f32.partialorder %v458, %v425
    %vm490 = vcmp.gt.f32.partialorder %v460, %v426
    %vm491 = vcmp.gt.f32.partialorder %v462, %v427
    %vm492 = vcmp.gt.f32.partialorder %v464, %v428
    %vm493 = vcmp.gt.f32.partialorder %v466, %v429
    %vm494 = vcmp.gt.f32.partialorder %v468, %v430
    %vm495 = vcmp.gt.f32.partialorder %v470, %v431
    %vm496 = vcmp.gt.f32.partialorder %v472, %v432
    %vm497 = vcmp.gt.f32.partialorder %v474, %v433
    %vm498 = vcmp.gt.f32.partialorder %v476, %v434
    %vm499 = vcmp.gt.f32.partialorder %v478, %v435
    %vm500 = vcmp.gt.f32.partialorder %v480, %v436
    %vm501 = vcmp.gt.f32.partialorder %v482, %v437
    %vm502 = vcmp.gt.f32.partialorder %v484, %v438
    %vm503 = vcmp.gt.f32.partialorder %v486, %v439
    %vm504 = vcmp.gt.f32.partialorder %v488, %v440
    %v505 = vmax.f32 %v425, %v458
    %v506 = vmax.f32 %v426, %v460
    %v507 = vmax.f32 %v427, %v462
    %v508 = vmax.f32 %v428, %v464
    %v509 = vmax.f32 %v429, %v466
    %v510 = vmax.f32 %v430, %v468
    %v511 = vmax.f32 %v431, %v470
    %v512 = vmax.f32 %v432, %v472
    %v513 = vmax.f32 %v433, %v474
    %v514 = vmax.f32 %v434, %v476
    %v515 = vmax.f32 %v435, %v478
    %v516 = vmax.f32 %v436, %v480
    %v517 = vmax.f32 %v437, %v482
    %v518 = vmax.f32 %v438, %v484
    %v519 = vmax.f32 %v439, %v486
    %v520 = vmax.f32 %v440, %v488
    %v521 = vsel %vm489, 6, %v441
    %v522 = vsel %vm490, 6, %v442
    %v523 = vsel %vm491, 6, %v443
    %v524 = vsel %vm492, 6, %v444
    %v525 = vsel %vm493, 6, %v445
    %v526 = vsel %vm494, 6, %v446
    %v527 = vsel %vm495, 6, %v447
    %v528 = vsel %vm496, 6, %v448
    %v529 = vsel %vm497, 6, %v449
    %v530 = vsel %vm498, 6, %v450
    %v531 = vsel %vm499, 6, %v451
    %v532 = vsel %vm500, 6, %v452
    %v533 = vsel %vm501, 6, %v453
    %v534 = vsel %vm502, 6, %v454
    %v535 = vsel %vm503, 6, %v455
    %v536 = vsel %vm504, 6, %v456
    %s537 = scalar_lea.vmem [#allocation2], 7
    %v538 = vld [vmem:[%s537] ss:$8 sm:$0x3]
    %s539 = scalar_lea.vmem [#allocation2], 23
    %v540 = vld [vmem:[%s539] ss:$8 sm:$0x3]
    %s541 = scalar_lea.vmem [#allocation2], 39
    %v542 = vld [vmem:[%s541] ss:$8 sm:$0x3]
    %s543 = scalar_lea.vmem [#allocation2], 55
    %v544 = vld [vmem:[%s543] ss:$8 sm:$0x3]
    %s545 = scalar_lea.vmem [#allocation2], 71
    %v546 = vld [vmem:[%s545] ss:$8 sm:$0x3]
    %s547 = scalar_lea.vmem [#allocation2], 87
    %v548 = vld [vmem:[%s547] ss:$8 sm:$0x3]
    %s549 = scalar_lea.vmem [#allocation2], 103
    %v550 = vld [vmem:[%s549] ss:$8 sm:$0x3]
    %s551 = scalar_lea.vmem [#allocation2], 119
    %v552 = vld [vmem:[%s551] ss:$8 sm:$0x3]
    %s553 = scalar_lea.vmem [#allocation2], 135
    %v554 = vld [vmem:[%s553] ss:$8 sm:$0x3]
    %s555 = scalar_lea.vmem [#allocation2], 151
    %v556 = vld [vmem:[%s555] ss:$8 sm:$0x3]
    %s557 = scalar_lea.vmem [#allocation2], 167
    %v558 = vld [vmem:[%s557] ss:$8 sm:$0x3]
    %s559 = scalar_lea.vmem [#allocation2], 183
    %v560 = vld [vmem:[%s559] ss:$8 sm:$0x3]
    %s561 = scalar_lea.vmem [#allocation2], 199
    %v562 = vld [vmem:[%s561] ss:$8 sm:$0x3]
    %s563 = scalar_lea.vmem [#allocation2], 215
    %v564 = vld [vmem:[%s563] ss:$8 sm:$0x3]
    %s565 = scalar_lea.vmem [#allocation2], 231
    %v566 = vld [vmem:[%s565] ss:$8 sm:$0x3]
    %s567 = scalar_lea.vmem [#allocation2], 247
    %v568 = vld [vmem:[%s567] ss:$8 sm:$0x3]
    %vm569 = vcmp.gt.f32.partialorder %v538, %v505
    %vm570 = vcmp.gt.f32.partialorder %v540, %v506
    %vm571 = vcmp.gt.f32.partialorder %v542, %v507
    %vm572 = vcmp.gt.f32.partialorder %v544, %v508
    %vm573 = vcmp.gt.f32.partialorder %v546, %v509
    %vm574 = vcmp.gt.f32.partialorder %v548, %v510
    %vm575 = vcmp.gt.f32.partialorder %v550, %v511
    %vm576 = vcmp.gt.f32.partialorder %v552, %v512
    %vm577 = vcmp.gt.f32.partialorder %v554, %v513
    %vm578 = vcmp.gt.f32.partialorder %v556, %v514
    %vm579 = vcmp.gt.f32.partialorder %v558, %v515
    %vm580 = vcmp.gt.f32.partialorder %v560, %v516
    %vm581 = vcmp.gt.f32.partialorder %v562, %v517
    %vm582 = vcmp.gt.f32.partialorder %v564, %v518
    %vm583 = vcmp.gt.f32.partialorder %v566, %v519
    %vm584 = vcmp.gt.f32.partialorder %v568, %v520
    %v585 = vmax.f32 %v505, %v538
    %v586 = vmax.f32 %v506, %v540
    %v587 = vmax.f32 %v507, %v542
    %v588 = vmax.f32 %v508, %v544
    %v589 = vmax.f32 %v509, %v546
    %v590 = vmax.f32 %v510, %v548
    %v591 = vmax.f32 %v511, %v550
    %v592 = vmax.f32 %v512, %v552
    %v593 = vmax.f32 %v513, %v554
    %v594 = vmax.f32 %v514, %v556
    %v595 = vmax.f32 %v515, %v558
    %v596 = vmax.f32 %v516, %v560
    %v597 = vmax.f32 %v517, %v562
    %v598 = vmax.f32 %v518, %v564
    %v599 = vmax.f32 %v519, %v566
    %v600 = vmax.f32 %v520, %v568
    %v601 = vsel %vm569, 7, %v521
    %v602 = vsel %vm570, 7, %v522
    %v603 = vsel %vm571, 7, %v523
    %v604 = vsel %vm572, 7, %v524
    %v605 = vsel %vm573, 7, %v525
    %v606 = vsel %vm574, 7, %v526
    %v607 = vsel %vm575, 7, %v527
    %v608 = vsel %vm576, 7, %v528
    %v609 = vsel %vm577, 7, %v529
    %v610 = vsel %vm578, 7, %v530
    %v611 = vsel %vm579, 7, %v531
    %v612 = vsel %vm580, 7, %v532
    %v613 = vsel %vm581, 7, %v533
    %v614 = vsel %vm582, 7, %v534
    %v615 = vsel %vm583, 7, %v535
    %v616 = vsel %vm584, 7, %v536
    %v633 = vcombine.low %v585, %v586
    %v634 = vcombine.low %v587, %v588
    %v635 = vcombine.low %v589, %v590
    %v636 = vcombine.low %v591, %v592
    %v638 = vunpack.c.l.s4 1966171168
    %v639 = vunpack.c.0.s8 %v638
    %v640 = vlaneseq
    %v641 = vshrl.u32 %v640, 7
    %v642 = vsub.s32 %v639, %v641
    %v643 = vrot.slane %v633, %v642
    %v645 = vunpack.c.l.s4 1966171168
    %v646 = vunpack.c.0.s8 %v645
    %v647 = vlaneseq
    %v648 = vshrl.u32 %v647, 7
    %v649 = vsub.s32 %v646, %v648
    %v650 = vrot.slane %v634, %v649
    %v652 = vunpack.c.l.s4 1966171168
    %v653 = vunpack.c.0.s8 %v652
    %v654 = vlaneseq
    %v655 = vshrl.u32 %v654, 7
    %v656 = vsub.s32 %v653, %v655
    %v657 = vrot.slane %v635, %v656
    %v659 = vunpack.c.l.s4 1966171168
    %v660 = vunpack.c.0.s8 %v659
    %v661 = vlaneseq
    %v662 = vshrl.u32 %v661, 7
    %v663 = vsub.s32 %v660, %v662
    %v664 = vrot.slane %v636, %v663
    %v665 = vcombine.low %v643, %v650
    %v666 = vcombine.high %v643, %v650
    %v667 = vcombine.low %v657, %v664
    %v668 = vcombine.high %v657, %v664
    %v670 = vunpack.c.l.s4 1966171168
    %v671 = vunpack.c.0.s8 %v670
    %v672 = vlaneseq
    %v673 = vshrl.u32 %v672, 7
    %v674 = vsub.s32 %v671, %v673
    %v675 = vrot.slane %v665, %v674
    %v677 = vunpack.c.l.s4 1966171168
    %v678 = vunpack.c.0.s8 %v677
    %v679 = vlaneseq
    %v680 = vshrl.u32 %v679, 7
    %v681 = vsub.s32 %v678, %v680
    %v682 = vrot.slane %v666, %v681
    %v684 = vunpack.c.l.s4 1966171168
    %v685 = vunpack.c.0.s8 %v684
    %v686 = vlaneseq
    %v687 = vshrl.u32 %v686, 7
    %v688 = vsub.s32 %v685, %v687
    %v689 = vrot.slane %v667, %v688
    %v691 = vunpack.c.l.s4 1966171168
    %v692 = vunpack.c.0.s8 %v691
    %v693 = vlaneseq
    %v694 = vshrl.u32 %v693, 7
    %v695 = vsub.s32 %v692, %v694
    %v696 = vrot.slane %v668, %v695
    %v697 = vcombine.low %v675, %v689
    %v698 = vcombine.low %v682, %v696
    %v699 = vcombine.low %v593, %v594
    %v700 = vcombine.low %v595, %v596
    %v701 = vcombine.low %v597, %v598
    %v702 = vcombine.low %v599, %v600
    %v704 = vunpack.c.l.s4 1966171168
    %v705 = vunpack.c.0.s8 %v704
    %v706 = vlaneseq
    %v707 = vshrl.u32 %v706, 7
    %v708 = vsub.s32 %v705, %v707
    %v709 = vrot.slane %v699, %v708
    %v711 = vunpack.c.l.s4 1966171168
    %v712 = vunpack.c.0.s8 %v711
    %v713 = vlaneseq
    %v714 = vshrl.u32 %v713, 7
    %v715 = vsub.s32 %v712, %v714
    %v716 = vrot.slane %v700, %v715
    %v718 = vunpack.c.l.s4 1966171168
    %v719 = vunpack.c.0.s8 %v718
    %v720 = vlaneseq
    %v721 = vshrl.u32 %v720, 7
    %v722 = vsub.s32 %v719, %v721
    %v723 = vrot.slane %v701, %v722
    %v725 = vunpack.c.l.s4 1966171168
    %v726 = vunpack.c.0.s8 %v725
    %v727 = vlaneseq
    %v728 = vshrl.u32 %v727, 7
    %v729 = vsub.s32 %v726, %v728
    %v730 = vrot.slane %v702, %v729
    %v731 = vcombine.low %v709, %v716
    %v732 = vcombine.high %v709, %v716
    %v733 = vcombine.low %v723, %v730
    %v734 = vcombine.high %v723, %v730
    %v736 = vunpack.c.l.s4 1966171168
    %v737 = vunpack.c.0.s8 %v736
    %v738 = vlaneseq
    %v739 = vshrl.u32 %v738, 7
    %v740 = vsub.s32 %v737, %v739
    %v741 = vrot.slane %v731, %v740
    %v743 = vunpack.c.l.s4 1966171168
    %v744 = vunpack.c.0.s8 %v743
    %v745 = vlaneseq
    %v746 = vshrl.u32 %v745, 7
    %v747 = vsub.s32 %v744, %v746
    %v748 = vrot.slane %v732, %v747
    %v750 = vunpack.c.l.s4 1966171168
    %v751 = vunpack.c.0.s8 %v750
    %v752 = vlaneseq
    %v753 = vshrl.u32 %v752, 7
    %v754 = vsub.s32 %v751, %v753
    %v755 = vrot.slane %v733, %v754
    %v757 = vunpack.c.l.s4 1966171168
    %v758 = vunpack.c.0.s8 %v757
    %v759 = vlaneseq
    %v760 = vshrl.u32 %v759, 7
    %v761 = vsub.s32 %v758, %v760
    %v762 = vrot.slane %v734, %v761
    %v763 = vcombine.low %v741, %v755
    %v764 = vcombine.low %v748, %v762
    %769 = vst [vmem:[#allocation5] sm:$0xff] %v697
    %770 = vst [vmem:[#allocation5 + $0x8] sm:$0xff] %v698
    %771 = vst [vmem:[#allocation5 + $0x10] sm:$0xff] %v763
    %772 = vst [vmem:[#allocation5 + $0x18] sm:$0xff] %v764
    %v773 = vcombine.low %v601, %v602
    %v774 = vcombine.low %v603, %v604
    %v775 = vcombine.low %v605, %v606
    %v776 = vcombine.low %v607, %v608
    %v778 = vunpack.c.l.s4 1966171168
    %v779 = vunpack.c.0.s8 %v778
    %v780 = vlaneseq
    %v781 = vshrl.u32 %v780, 7
    %v782 = vsub.s32 %v779, %v781
    %v783 = vrot.slane %v773, %v782
    %v785 = vunpack.c.l.s4 1966171168
    %v786 = vunpack.c.0.s8 %v785
    %v787 = vlaneseq
    %v788 = vshrl.u32 %v787, 7
    %v789 = vsub.s32 %v786, %v788
    %v790 = vrot.slane %v774, %v789
    %v792 = vunpack.c.l.s4 1966171168
    %v793 = vunpack.c.0.s8 %v792
    %v794 = vlaneseq
    %v795 = vshrl.u32 %v794, 7
    %v796 = vsub.s32 %v793, %v795
    %v797 = vrot.slane %v775, %v796
    %v799 = vunpack.c.l.s4 1966171168
    %v800 = vunpack.c.0.s8 %v799
    %v801 = vlaneseq
    %v802 = vshrl.u32 %v801, 7
    %v803 = vsub.s32 %v800, %v802
    %v804 = vrot.slane %v776, %v803
    %v805 = vcombine.low %v783, %v790
    %v806 = vcombine.high %v783, %v790
    %v807 = vcombine.low %v797, %v804
    %v808 = vcombine.high %v797, %v804
    %v810 = vunpack.c.l.s4 1966171168
    %v811 = vunpack.c.0.s8 %v810
    %v812 = vlaneseq
    %v813 = vshrl.u32 %v812, 7
    %v814 = vsub.s32 %v811, %v813
    %v815 = vrot.slane %v805, %v814
    %v817 = vunpack.c.l.s4 1966171168
    %v818 = vunpack.c.0.s8 %v817
    %v819 = vlaneseq
    %v820 = vshrl.u32 %v819, 7
    %v821 = vsub.s32 %v818, %v820
    %v822 = vrot.slane %v806, %v821
    %v824 = vunpack.c.l.s4 1966171168
    %v825 = vunpack.c.0.s8 %v824
    %v826 = vlaneseq
    %v827 = vshrl.u32 %v826, 7
    %v828 = vsub.s32 %v825, %v827
    %v829 = vrot.slane %v807, %v828
    %v831 = vunpack.c.l.s4 1966171168
    %v832 = vunpack.c.0.s8 %v831
    %v833 = vlaneseq
    %v834 = vshrl.u32 %v833, 7
    %v835 = vsub.s32 %v832, %v834
    %v836 = vrot.slane %v808, %v835
    %v837 = vcombine.low %v815, %v829
    %v838 = vcombine.low %v822, %v836
    %v839 = vcombine.low %v609, %v610
    %v840 = vcombine.low %v611, %v612
    %v841 = vcombine.low %v613, %v614
    %v842 = vcombine.low %v615, %v616
    %v844 = vunpack.c.l.s4 1966171168
    %v845 = vunpack.c.0.s8 %v844
    %v846 = vlaneseq
    %v847 = vshrl.u32 %v846, 7
    %v848 = vsub.s32 %v845, %v847
    %v849 = vrot.slane %v839, %v848
    %v851 = vunpack.c.l.s4 1966171168
    %v852 = vunpack.c.0.s8 %v851
    %v853 = vlaneseq
    %v854 = vshrl.u32 %v853, 7
    %v855 = vsub.s32 %v852, %v854
    %v856 = vrot.slane %v840, %v855
    %v858 = vunpack.c.l.s4 1966171168
    %v859 = vunpack.c.0.s8 %v858
    %v860 = vlaneseq
    %v861 = vshrl.u32 %v860, 7
    %v862 = vsub.s32 %v859, %v861
    %v863 = vrot.slane %v841, %v862
    %v865 = vunpack.c.l.s4 1966171168
    %v866 = vunpack.c.0.s8 %v865
    %v867 = vlaneseq
    %v868 = vshrl.u32 %v867, 7
    %v869 = vsub.s32 %v866, %v868
    %v870 = vrot.slane %v842, %v869
    %v871 = vcombine.low %v849, %v856
    %v872 = vcombine.high %v849, %v856
    %v873 = vcombine.low %v863, %v870
    %v874 = vcombine.high %v863, %v870
    %v876 = vunpack.c.l.s4 1966171168
    %v877 = vunpack.c.0.s8 %v876
    %v878 = vlaneseq
    %v879 = vshrl.u32 %v878, 7
    %v880 = vsub.s32 %v877, %v879
    %v881 = vrot.slane %v871, %v880
    %v883 = vunpack.c.l.s4 1966171168
    %v884 = vunpack.c.0.s8 %v883
    %v885 = vlaneseq
    %v886 = vshrl.u32 %v885, 7
    %v887 = vsub.s32 %v884, %v886
    %v888 = vrot.slane %v872, %v887
    %v890 = vunpack.c.l.s4 1966171168
    %v891 = vunpack.c.0.s8 %v890
    %v892 = vlaneseq
    %v893 = vshrl.u32 %v892, 7
    %v894 = vsub.s32 %v891, %v893
    %v895 = vrot.slane %v873, %v894
    %v897 = vunpack.c.l.s4 1966171168
    %v898 = vunpack.c.0.s8 %v897
    %v899 = vlaneseq
    %v900 = vshrl.u32 %v899, 7
    %v901 = vsub.s32 %v898, %v900
    %v902 = vrot.slane %v874, %v901
    %v903 = vcombine.low %v881, %v895
    %v904 = vcombine.low %v888, %v902
    %905 = vst [vmem:[#allocation6] sm:$0xff] %v837
    %906 = vst [vmem:[#allocation6 + $0x8] sm:$0xff] %v838
    %907 = vst [vmem:[#allocation6 + $0x10] sm:$0xff] %v903
    %908 = vst [vmem:[#allocation6 + $0x18] sm:$0xff] %v904
    // Predicated region
    $region10: #{tpu_custom_call.1} parent=1 // pred_check
      _
    $region11: #{tpu_custom_call.1} parent=1 // pred_check_branch
      %910 = sbr.rel (0) target = $region13
    $region12: #{tpu_custom_call.1} parent=1 // pred_region
      %s912 = ssub.s32 512, 512
      %913 = vsyncadd [#allocation4], %s912
      %s914 = sshll.u32 [#allocation5], 4
      %s915 = int_to_ptr.vmem [resolvable:$true] %s914
      %920 = dma.vmem_to_hbm [thread:$0]  %s915, 512, %s1, [#allocation4], 256, 256, 16
    $region13: #{tpu_custom_call.1} parent=1 // pred_fallthru
      _
    // Predicated region
    $region14: #{tpu_custom_call.1} parent=1 // pred_check
      _
    $region15: #{tpu_custom_call.1} parent=1 // pred_check_branch
      %922 = sbr.rel (0) target = $region17
    $region16: #{tpu_custom_call.1} parent=1 // pred_region
      %s924 = ssub.s32 512, 512
      %925 = vsyncadd [#allocation7], %s924
      %s926 = sshll.u32 [#allocation6], 4
      %s927 = int_to_ptr.vmem [resolvable:$true] %s926
      %932 = dma.vmem_to_hbm [thread:$0]  %s927, 512, %s2, [#allocation7], 256, 256, 16
    $region17: #{tpu_custom_call.1} parent=1 // pred_fallthru
      _
    // Predicated region
    $region18: #{tpu_custom_call.1} parent=1 // pred_check
      _
    $region19: #{tpu_custom_call.1} parent=1 // pred_check_branch
      %934 = sbr.rel (0) target = $region21
    $region20: #{tpu_custom_call.1} parent=1 // pred_region
      %935 = dma.done [#allocation4], 512
    $region21: #{tpu_custom_call.1} parent=1 // pred_fallthru
      _
    // Predicated region
    $region22: #{tpu_custom_call.1} parent=1 // pred_check
      _
    $region23: #{tpu_custom_call.1} parent=1 // pred_check_branch
      %937 = sbr.rel (0) target = $region25
    $region24: #{tpu_custom_call.1} parent=1 // pred_region
      %938 = dma.done [#allocation7], 512
    $region25: #{tpu_custom_call.1} parent=1 // pred_fallthru
      _
    %939 = vsyncpa [#allocation3], 1
    %940 = vsyncpa [#allocation4], 1
    %941 = vsyncpa [#allocation7], 1

</llo_original>
